<compile_context>
chip_gen: v7x
topology: tpu7x:2x2x1
jax: 0.10.0
libtpu: 0.0.40
codegen_flags: <defaults>
</compile_context>

<pallas_src>
import functools

import jax
import jax.numpy as jnp
from jax import lax
from jax.experimental import pallas as pl
from jax.experimental.pallas import tpu as pltpu


def _round_up(x, m):
    return ((x + m - 1) // m) * m


def dense_nn_kernel(x_ids_ref, feat_ref, wf_ref, w1e_ref, b1_ref, w2_ref,
                    b2_ref, w3_ref, b3_ref, out_ref, *, normalize_score,
                    unroll):
    n_tc, BB, Tc = x_ids_ref.shape            # ids laid out (n_chunks, BB, Tc)
    Vp = wf_ref.shape[0]

    # Embedding lookup + mean over time as counts @ W_fold (1/T folded in).
    # counts[b, v] = #{t : ids[b, t] == v}, built in T-chunks to bound the live
    # one-hot to (BB, Tc, Vp).  Padded timesteps carry the sentinel id Vp which
    # never matches the iota -> contribute zero.
    def chunk(c, counts):
        ids_c = x_ids_ref[c]                                       # (BB, Tc)
        oh = (ids_c[:, :, None] ==
              lax.broadcasted_iota(jnp.int32, (BB, Tc, Vp), 2)
              ).astype(jnp.float32)                                # (BB,Tc,Vp)
        return counts + jnp.sum(oh, axis=1)                        # (BB, Vp)

    counts = lax.fori_loop(0, n_tc, chunk,
                           jnp.zeros((BB, Vp), jnp.float32), unroll=unroll)

    # fc_1 over cat([mean_emb, feat]): the mean-embedding half is the folded
    # counts @ W_fold matmul; the feature half is a tiny K=E matmul.
    z = (jnp.dot(counts.astype(jnp.bfloat16), wf_ref[...],
                 preferred_element_type=jnp.float32)
         + jnp.dot(feat_ref[...].astype(jnp.bfloat16), w1e_ref[...],
                   preferred_element_type=jnp.float32)
         + b1_ref[...])                                            # (BB, H0)
    z = jnp.maximum(z, 0.0)                    # relu; dropout = identity (eval)
    z = jnp.dot(z.astype(jnp.bfloat16), w2_ref[...],
                preferred_element_type=jnp.float32) + b2_ref[...]  # (BB, H1)
    z = jnp.maximum(z, 0.0)                    # relu; dropout = identity (eval)

    # fc_3: single output column -> VPU multiply + lane reduce; bias from SMEM.
    y = jnp.sum(z * w3_ref[...], axis=-1, keepdims=True) + b3_ref[0]  # (BB, 1)
    y = jax.nn.sigmoid(y) if normalize_score else jnp.maximum(y, 0.0)
    out_ref[...] = y.reshape(1, 1, BB)         # lane-dense store (no (BB,1) vst.msk)


def dense_nn_forward(x_ids, lengths, feat, params, *, normalize_score=True,
                     batch_block=128, time_chunk=8):
    del lengths  # torch.mean(dim=1) in the reference forward ignores lengths.
    # TODO(synk): use_features=False path (no feature concat) not implemented.
    B, T = x_ids.shape
    V, D = params["emb"].shape
    E = feat.shape[1]
    H0 = params["fc1_w"].shape[0]
    H1 = params["fc2_w"].shape[0]

    # ---- host-side weight prep (PyTorch Linear: y = x @ W.T + b) ----
    # Fold emb @ W1_emb and the 1/T mean scale into one (Vp, H0) matrix.
    Vp = _round_up(max(V, 1), 128)
    w_fold = (params["emb"].astype(jnp.float32)
              @ params["fc1_w"][:, :D].T.astype(jnp.float32)) * (1.0 / T)
    w_fold = jnp.pad(w_fold, ((0, Vp - V), (0, 0))).astype(jnp.bfloat16)
    w1e = params["fc1_w"][:, D:].T.astype(jnp.bfloat16)     # (E, H0)
    b1 = params["fc1_b"][None, :].astype(jnp.float32)       # (1, H0)
    w2 = params["fc2_w"].T.astype(jnp.bfloat16)              # (H0, H1)
    b2 = params["fc2_b"][None, :].astype(jnp.float32)       # (1, H1)
    w3 = params["fc3_w"].astype(jnp.float32)                 # (1, H1) kept f32 (VPU path)
    b3 = params["fc3_b"].reshape((1,)).astype(jnp.float32)   # scalar -> SMEM

    # ---- batch tiling: large sublane-aligned tile, >=2 grid steps if possible ----
    BB = _round_up(min(batch_block, max(B, 1)), 8)
    if B <= BB and B > 8:                      # keep n_b >= 2 so v7x's 2nd TC is used
        BB = _round_up(pl.cdiv(B, 2), 8)
    n_b = pl.cdiv(B, BB)
    B_pad = n_b * BB

    # ---- time chunking for the one-hot counts build ----
    Tc = int(min(time_chunk, T))
    Tp = _round_up(T, Tc)
    n_tc = Tp // Tc

    # Pad ids with the sentinel Vp (out of iota range -> zero contribution).
    ids = jnp.pad(x_ids.astype(jnp.int32),
                  ((0, B_pad - B), (0, Tp - T)), constant_values=Vp)
    ids3 = ids.reshape(B_pad, n_tc, Tc).transpose(1, 0, 2)    # (n_tc, B_pad, Tc)
    feat_p = jnp.pad(feat.astype(jnp.float32), ((0, B_pad - B), (0, 0)))

    kernel = functools.partial(dense_nn_kernel,
                               normalize_score=normalize_score,
                               unroll=(n_tc <= 8))

    rep = lambda i: (0, 0)   # grid-invariant weight blocks, single-buffered
    rep_spec = lambda shape: pl.BlockSpec(shape, rep, pipeline_mode=pl.Buffered(1))

    out = pl.pallas_call(
        kernel,
        out_shape=jax.ShapeDtypeStruct((n_b, 1, BB), jnp.float32),
        grid=(n_b,),
        in_specs=[
            pl.BlockSpec((n_tc, BB, Tc), lambda i: (0, i, 0)),   # ids chunks
            pl.BlockSpec((BB, E), lambda i: (i, 0)),             # feat
            rep_spec((Vp, H0)),                                  # folded emb@W1 (+1/T)
            rep_spec((E, H0)),                                   # fc1 feature half
            rep_spec((1, H0)),                                   # fc1 bias
            rep_spec((H0, H1)),                                  # fc2
            rep_spec((1, H1)),                                   # fc2 bias
            rep_spec((1, H1)),                                   # fc3 row
            pl.BlockSpec(memory_space=pltpu.SMEM),               # fc3 bias scalar
        ],
        out_specs=pl.BlockSpec((1, 1, BB), lambda i: (i, 0, 0)), # lane-dense out
        compiler_params=pltpu.CompilerParams(
            dimension_semantics=("parallel",),
            vmem_limit_bytes=64 * 1024 * 1024),
    )(ids3, feat_p, w_fold, w1e, b1, w2, b2, w3, b3)
    return out.reshape(-1)[:B]                 # .squeeze() in the torch forward


def _reference_forward(x_ids, feat, params, *, normalize_score=True):
    """Pure-JAX reference matching the PyTorch Dense_NN forward semantics."""
    x = params["emb"][x_ids]                             # (B, T, D)
    x = jnp.mean(x, axis=1)                              # (B, D)
    x = jnp.concatenate([x, feat], axis=1)               # (B, D+E)
    x = jnp.maximum(x @ params["fc1_w"].T + params["fc1_b"], 0.0)
    x = jnp.maximum(x @ params["fc2_w"].T + params["fc2_b"], 0.0)
    y = (x @ params["fc3_w"].T + params["fc3_b"])[:, 0]
    return jax.nn.sigmoid(y) if normalize_score else jnp.maximum(y, 0.0)


if __name__ == "__main__":
    # Small shapes consistent with the module: dim=32, extra_dim=6,
    # hidden_size=(32, 16), batch=2, seq=8, vocab=20.
    B, T, V, D, E, H0, H1 = 2, 8, 20, 32, 6, 32, 16

    key = jax.random.PRNGKey(0)
    ks = jax.random.split(key, 10)
    x_ids = jax.random.randint(ks[0], (B, T), 0, V, dtype=jnp.int32)
    lengths = jnp.full((B,), T, dtype=jnp.int32)
    feat = jax.random.normal(ks[1], (B, E), jnp.float32)

    params = {
        "emb":   jax.random.normal(ks[2], (V, D), jnp.float32) * 0.1,
        "fc1_w": jax.random.normal(ks[3], (H0, D + E), jnp.float32) * 0.1,
        "fc1_b": jax.random.normal(ks[4], (H0,), jnp.float32) * 0.1,
        "fc2_w": jax.random.normal(ks[5], (H1, H0), jnp.float32) * 0.1,
        "fc2_b": jax.random.normal(ks[6], (H1,), jnp.float32) * 0.1,
        "fc3_w": jax.random.normal(ks[7], (1, H1), jnp.float32) * 0.1,
        "fc3_b": jax.random.normal(ks[8], (1,), jnp.float32) * 0.1,
    }

    out = dense_nn_forward(x_ids, lengths, feat, params, normalize_score=True)
    jax.block_until_ready(out)
    assert out.shape == (B,)

    ref = _reference_forward(x_ids, feat, params, normalize_score=True)
    assert jnp.allclose(out, ref, atol=3e-3, rtol=3e-3), (out, ref)

    print("KERNEL_OK")
</pallas_src>

<mosaic_0001>
module attributes {stable_mosaic.version = 11 : i64} {
  func.func @dense_nn_kernel(%arg0: i32, %arg1: memref<1x8x8xi32, #tpu.memory_space<vmem>>, %arg2: memref<8x6xf32, #tpu.memory_space<vmem>>, %arg3: memref<128x32xbf16, #tpu.memory_space<vmem>>, %arg4: memref<6x32xbf16, #tpu.memory_space<vmem>>, %arg5: memref<1x32xf32, #tpu.memory_space<vmem>>, %arg6: memref<32x16xbf16, #tpu.memory_space<vmem>>, %arg7: memref<1x16xf32, #tpu.memory_space<vmem>>, %arg8: memref<1x16xf32, #tpu.memory_space<vmem>>, %arg9: memref<1xf32, #tpu.memory_space<smem>>, %arg10: memref<1x1x8xf32, #tpu.memory_space<vmem>>) attributes {dimension_semantics = [#tpu.dimension_semantics<parallel>], iteration_bounds = array<i64: 1>, scalar_prefetch = 0 : i64, scratch_operands = 0 : i64, tpu.core_type = #tpu.core_type<tc>, window_params = [{transform_indices = @transform_0, window_bounds = array<i64: 1, 8, 8>}, {transform_indices = @transform_1, window_bounds = array<i64: 8, 6>}, {pipeline_mode = #tpu.pipeline_mode<synchronous>, transform_indices = @transform_2, window_bounds = array<i64: 128, 32>}, {pipeline_mode = #tpu.pipeline_mode<synchronous>, transform_indices = @transform_3, window_bounds = array<i64: 6, 32>}, {pipeline_mode = #tpu.pipeline_mode<synchronous>, transform_indices = @transform_4, window_bounds = array<i64: 1, 32>}, {pipeline_mode = #tpu.pipeline_mode<synchronous>, transform_indices = @transform_5, window_bounds = array<i64: 32, 16>}, {pipeline_mode = #tpu.pipeline_mode<synchronous>, transform_indices = @transform_6, window_bounds = array<i64: 1, 16>}, {pipeline_mode = #tpu.pipeline_mode<synchronous>, transform_indices = @transform_7, window_bounds = array<i64: 1, 16>}, {transform_indices = @transform_8, window_bounds = array<i64: 1>}, {transform_indices = @transform_9, window_bounds = array<i64: 1, 1, 8>}]} {
    %cst = arith.constant 0.000000e+00 : f32
    %0 = vector.broadcast %cst : f32 to vector<8x128xf32>
    %c0_i32 = arith.constant 0 : i32
    %1 = arith.index_cast %c0_i32 : i32 to index
    %c0 = arith.constant 0 : index
    %c0_0 = arith.constant 0 : index
    %2 = vector.load %arg1[%1, %c0, %c0_0] : memref<1x8x8xi32, #tpu.memory_space<vmem>>, vector<1x8x8xi32>
    %3 = vector.shape_cast %2 : vector<1x8x8xi32> to vector<8x8xi32>
    %4 = vector.shape_cast %3 : vector<8x8xi32> to vector<8x8x1xi32>
    %5 = tpu.iota {dimensions = array<i32: 2>} : vector<8x8x128xi32>
    %6 = vector.broadcast %4 : vector<8x8x1xi32> to vector<8x8x128xi32>
    %7 = arith.cmpi eq, %6, %5 : vector<8x8x128xi32>
    %8 = arith.extui %7 : vector<8x8x128xi1> to vector<8x8x128xi32>
    %9 = arith.sitofp %8 : vector<8x8x128xi32> to vector<8x8x128xf32>
    %cst_1 = arith.constant dense<0.000000e+00> : vector<8x128xf32>
    %10 = vector.multi_reduction <add>, %9, %cst_1 [1] : vector<8x8x128xf32> to vector<8x128xf32>
    %11 = arith.addf %0, %10 : vector<8x128xf32>
    %c1_i32 = arith.constant 1 : i32
    %12 = arith.truncf %11 : vector<8x128xf32> to vector<8x128xbf16>
    %c0_2 = arith.constant 0 : index
    %c0_3 = arith.constant 0 : index
    %13 = vector.load %arg3[%c0_2, %c0_3] : memref<128x32xbf16, #tpu.memory_space<vmem>>, vector<128x32xbf16>
    %cst_4 = arith.constant dense<0.000000e+00> : vector<8x32xf32>
    %14 = tpu.matmul %12, %13, %cst_4 {dimension_numbers = #tpu.dot_dimension_numbers<[1], [0], [0], [1], [0, 0, 1, 1], [], []>} : vector<8x128xbf16>, vector<128x32xbf16>, vector<8x32xf32> -> vector<8x32xf32>
    %c0_5 = arith.constant 0 : index
    %c0_6 = arith.constant 0 : index
    %15 = vector.load %arg2[%c0_5, %c0_6] : memref<8x6xf32, #tpu.memory_space<vmem>>, vector<8x6xf32>
    %16 = arith.truncf %15 : vector<8x6xf32> to vector<8x6xbf16>
    %c0_7 = arith.constant 0 : index
    %c0_8 = arith.constant 0 : index
    %17 = vector.load %arg4[%c0_7, %c0_8] : memref<6x32xbf16, #tpu.memory_space<vmem>>, vector<6x32xbf16>
    %cst_9 = arith.constant dense<0.000000e+00> : vector<8x32xf32>
    %18 = tpu.matmul %16, %17, %cst_9 {dimension_numbers = #tpu.dot_dimension_numbers<[1], [0], [0], [1], [0, 0, 1, 1], [], []>} : vector<8x6xbf16>, vector<6x32xbf16>, vector<8x32xf32> -> vector<8x32xf32>
    %19 = arith.addf %14, %18 : vector<8x32xf32>
    %c0_10 = arith.constant 0 : index
    %c0_11 = arith.constant 0 : index
    %20 = vector.load %arg5[%c0_10, %c0_11] : memref<1x32xf32, #tpu.memory_space<vmem>>, vector<1x32xf32>
    %21 = vector.broadcast %20 : vector<1x32xf32> to vector<8x32xf32>
    %22 = arith.addf %19, %21 : vector<8x32xf32>
    %cst_12 = arith.constant 0.000000e+00 : f32
    %23 = vector.broadcast %cst_12 : f32 to vector<8x32xf32>
    %24 = arith.maximumf %22, %23 : vector<8x32xf32>
    %25 = arith.truncf %24 : vector<8x32xf32> to vector<8x32xbf16>
    %c0_13 = arith.constant 0 : index
    %c0_14 = arith.constant 0 : index
    %26 = vector.load %arg6[%c0_13, %c0_14] : memref<32x16xbf16, #tpu.memory_space<vmem>>, vector<32x16xbf16>
    %cst_15 = arith.constant dense<0.000000e+00> : vector<8x16xf32>
    %27 = tpu.matmul %25, %26, %cst_15 {dimension_numbers = #tpu.dot_dimension_numbers<[1], [0], [0], [1], [0, 0, 1, 1], [], []>} : vector<8x32xbf16>, vector<32x16xbf16>, vector<8x16xf32> -> vector<8x16xf32>
    %c0_16 = arith.constant 0 : index
    %c0_17 = arith.constant 0 : index
    %28 = vector.load %arg7[%c0_16, %c0_17] : memref<1x16xf32, #tpu.memory_space<vmem>>, vector<1x16xf32>
    %29 = vector.broadcast %28 : vector<1x16xf32> to vector<8x16xf32>
    %30 = arith.addf %27, %29 : vector<8x16xf32>
    %cst_18 = arith.constant 0.000000e+00 : f32
    %31 = vector.broadcast %cst_18 : f32 to vector<8x16xf32>
    %32 = arith.maximumf %30, %31 : vector<8x16xf32>
    %c0_19 = arith.constant 0 : index
    %c0_20 = arith.constant 0 : index
    %33 = vector.load %arg8[%c0_19, %c0_20] : memref<1x16xf32, #tpu.memory_space<vmem>>, vector<1x16xf32>
    %34 = vector.broadcast %33 : vector<1x16xf32> to vector<8x16xf32>
    %35 = arith.mulf %32, %34 : vector<8x16xf32>
    %cst_21 = arith.constant dense<0.000000e+00> : vector<8xf32>
    %36 = vector.multi_reduction <add>, %35, %cst_21 [1] : vector<8x16xf32> to vector<8xf32>
    %37 = vector.shape_cast %36 : vector<8xf32> to vector<8x1xf32>
    %c0_22 = arith.constant 0 : index
    %38 = memref.load %arg9[%c0_22] : memref<1xf32, #tpu.memory_space<smem>>
    %39 = vector.broadcast %38 : f32 to vector<8x1xf32>
    %40 = arith.addf %37, %39 : vector<8x1xf32>
    %41 = arith.negf %40 : vector<8x1xf32>
    %42 = math.exp %41 : vector<8x1xf32>
    %cst_23 = arith.constant 1.000000e+00 : f32
    %43 = vector.broadcast %cst_23 : f32 to vector<8x1xf32>
    %44 = arith.addf %43, %42 : vector<8x1xf32>
    %45 = arith.divf %43, %44 : vector<8x1xf32>
    %46 = vector.shape_cast %45 : vector<8x1xf32> to vector<1x1x8xf32>
    %c0_24 = arith.constant 0 : index
    %c0_25 = arith.constant 0 : index
    %c0_26 = arith.constant 0 : index
    %47 = vector.load %arg10[%c0_24, %c0_25, %c0_26] : memref<1x1x8xf32, #tpu.memory_space<vmem>>, vector<1x1x8xf32>
    tpu.vector_store %arg10[%c0_24, %c0_25, %c0_26], %46 {strides = array<i32>} : memref<1x1x8xf32, #tpu.memory_space<vmem>>, vector<1x1x8xf32>,
    return
  }
  func.func @transform_0(%arg0: i32) -> (i32, i32, i32) {
    %c0_i32 = arith.constant 0 : i32
    %c0_i32_0 = arith.constant 0 : i32
    %c0_i32_1 = arith.constant 0 : i32
    return %c0_i32, %arg0, %c0_i32_0 : i32, i32, i32
  }
  func.func @transform_1(%arg0: i32) -> (i32, i32) {
    %c0_i32 = arith.constant 0 : i32
    %c0_i32_0 = arith.constant 0 : i32
    return %arg0, %c0_i32 : i32, i32
  }
  func.func @transform_2(%arg0: i32) -> (i32, i32) {
    %c0_i32 = arith.constant 0 : i32
    %c0_i32_0 = arith.constant 0 : i32
    %c0_i32_1 = arith.constant 0 : i32
    return %c0_i32, %c0_i32_0 : i32, i32
  }
  func.func @transform_3(%arg0: i32) -> (i32, i32) {
    %c0_i32 = arith.constant 0 : i32
    %c0_i32_0 = arith.constant 0 : i32
    %c0_i32_1 = arith.constant 0 : i32
    return %c0_i32, %c0_i32_0 : i32, i32
  }
  func.func @transform_4(%arg0: i32) -> (i32, i32) {
    %c0_i32 = arith.constant 0 : i32
    %c0_i32_0 = arith.constant 0 : i32
    %c0_i32_1 = arith.constant 0 : i32
    return %c0_i32, %c0_i32_0 : i32, i32
  }
  func.func @transform_5(%arg0: i32) -> (i32, i32) {
    %c0_i32 = arith.constant 0 : i32
    %c0_i32_0 = arith.constant 0 : i32
    %c0_i32_1 = arith.constant 0 : i32
    return %c0_i32, %c0_i32_0 : i32, i32
  }
  func.func @transform_6(%arg0: i32) -> (i32, i32) {
    %c0_i32 = arith.constant 0 : i32
    %c0_i32_0 = arith.constant 0 : i32
    %c0_i32_1 = arith.constant 0 : i32
    return %c0_i32, %c0_i32_0 : i32, i32
  }
  func.func @transform_7(%arg0: i32) -> (i32, i32) {
    %c0_i32 = arith.constant 0 : i32
    %c0_i32_0 = arith.constant 0 : i32
    %c0_i32_1 = arith.constant 0 : i32
    return %c0_i32, %c0_i32_0 : i32, i32
  }
  func.func @transform_8(%arg0: i32) -> i32 {
    %c0_i32 = arith.constant 0 : i32
    %c0_i32_0 = arith.constant 0 : i32
    return %c0_i32 : i32
  }
  func.func @transform_9(%arg0: i32) -> (i32, i32, i32) {
    %c0_i32 = arith.constant 0 : i32
    %c0_i32_0 = arith.constant 0 : i32
    %c0_i32_1 = arith.constant 0 : i32
    return %arg0, %c0_i32, %c0_i32_0 : i32, i32, i32
  }
}

</mosaic_0001>

<llo_original>
// kernel: tpu_custom_call.1
$region0: #{tpu_custom_call.1}
  #allocation0 [shape = 'u32[]', space=smem, size = 0x4, offset = 0x4, fixed_abs, tag = 'smem constant byte address 0x4 - core index']
  #allocation1 [shape = 'u32[144,128]{1,0:T(1,128)}', space=vmem, size = 0x12000, scoped, tag = 'internal scratch']
  #allocation2 [shape = 'f32[1]{0:T(128)S(6)}', space=smem, size = 0x200, scoped, tag = 'scoped memory for tpu_custom_call.1']
  %s0 = inlined_call_operand.hbm [shape: s32[1,8,8], index: 0, kind: input, shape index: {}]
  %s1 = inlined_call_operand.hbm [shape: f32[8,6], index: 1, kind: input, shape index: {}]
  %s2 = inlined_call_operand.hbm [shape: bf16[128,32], index: 2, kind: input, shape index: {}]
  %s3 = inlined_call_operand.hbm [shape: bf16[6,32], index: 3, kind: input, shape index: {}]
  %s4 = inlined_call_operand.hbm [shape: f32[1,32], index: 4, kind: input, shape index: {}]
  %s5 = inlined_call_operand.hbm [shape: bf16[32,16], index: 5, kind: input, shape index: {}]
  %s6 = inlined_call_operand.hbm [shape: f32[1,16], index: 6, kind: input, shape index: {}]
  %s7 = inlined_call_operand.hbm [shape: f32[1,16], index: 7, kind: input, shape index: {}]
  %s8 = inlined_call_operand.<no memory space> [shape: f32[1], index: 8, kind: input, shape index: {}]
  %s9 = inlined_call_operand.hbm [shape: f32[1,1,8], index: 9, kind: output, shape index: {}]
  %s10 = sld [smem:[#allocation0]]
  $region78: #{tpu_custom_call.1} parent=0
    _
  %s12 = ssub.s32 1, %s10
  %s13 = scalar_select 0, %s12, %s10
  %14 = sst [smem:[#allocation2]] %s8
  $region1: #{tpu_custom_call.1} parent=0
    #allocation3 [shape = 'u8[4096]{0}', space=vmem, size = 0x1000, scoped, tag = 'input window, operand 0, single buffered']
    #allocation4 [shape = 's32[1]{0}', space=sflag, size = 0x4, scoped, tag = 'scoped memory for tpu_custom_call.1']
    #allocation5 [shape = 's32[1]{0}', space=sflag, size = 0x4, scoped, tag = 'scoped memory for tpu_custom_call.1']
    #allocation6 [shape = 'u8[4096]{0}', space=vmem, size = 0x1000, scoped, tag = 'input window, operand 1, single buffered']
    #allocation7 [shape = 's32[1]{0}', space=sflag, size = 0x4, scoped, tag = 'scoped memory for tpu_custom_call.1']
    #allocation8 [shape = 'u8[32768]{0}', space=vmem, size = 0x8000, scoped, tag = 'input window, operand 2, single buffered']
    #allocation9 [shape = 'u8[2048]{0}', space=vmem, size = 0x800, scoped, tag = 'input window, operand 3, single buffered']
    #allocation10 [shape = 's32[1]{0}', space=sflag, size = 0x4, scoped, tag = 'scoped memory for tpu_custom_call.1']
    #allocation11 [shape = 'u8[512]{0}', space=vmem, size = 0x400, scoped, tag = 'input window, operand 4, single buffered']
    #allocation12 [shape = 'u8[8192]{0}', space=vmem, size = 0x2000, scoped, tag = 'input window, operand 5, single buffered']
    #allocation13 [shape = 's32[1]{0}', space=sflag, size = 0x4, scoped, tag = 'scoped memory for tpu_custom_call.1']
    #allocation14 [shape = 'u8[512]{0}', space=vmem, size = 0x400, scoped, tag = 'input window, operand 6, single buffered']
    #allocation15 [shape = 'u8[512]{0}', space=vmem, size = 0x400, scoped, tag = 'input window, operand 7, single buffered']
    #allocation16 [shape = 's32[1]{0}', space=sflag, size = 0x4, scoped, tag = 'scoped memory for tpu_custom_call.1']
    #allocation17 [shape = 'u8[512]{0}', space=vmem, size = 0x400, scoped, tag = 'output window, operand 0, single buffered']
    %15 = vsyncpa [#allocation4], 0
    %16 = vsyncpa [#allocation7], 0
    %17 = vsyncpa [#allocation10], 0
    %18 = vsyncpa [#allocation13], 0
    %19 = vsyncpa [#allocation16], 0
    %20 = vsyncpa [#allocation5], 0
    // Predicated region
    $region2: #{tpu_custom_call.1} parent=1 // pred_check
      _
    $region3: #{tpu_custom_call.1} parent=1 // pred_check_branch
      %22 = sbr.rel (0) target = $region5
    $region4: #{tpu_custom_call.1} parent=1 // pred_region
      %s24 = ssub.s32 128, 128
      %25 = vsyncadd [#allocation4], %s24
      %s27 = sshll.u32 [#allocation3], 4
      %s28 = int_to_ptr.vmem [resolvable:$true] %s27
      %30 = dma.hbm_to_vmem [thread:$0]  %s0, 128, %s28, [#allocation4]
    $region5: #{tpu_custom_call.1} parent=1 // pred_fallthru
      _
    // Predicated region
    $region6: #{tpu_custom_call.1} parent=1 // pred_check
      _
    $region7: #{tpu_custom_call.1} parent=1 // pred_check_branch
      %32 = sbr.rel (0) target = $region9
    $region8: #{tpu_custom_call.1} parent=1 // pred_region
      %s34 = ssub.s32 128, 128
      %35 = vsyncadd [#allocation7], %s34
      %s37 = sshll.u32 [#allocation6], 4
      %s38 = int_to_ptr.vmem [resolvable:$true] %s37
      %40 = dma.hbm_to_vmem [thread:$0]  %s1, 128, %s38, [#allocation7]
    $region9: #{tpu_custom_call.1} parent=1 // pred_fallthru
      _
    // Predicated region
    $region10: #{tpu_custom_call.1} parent=1 // pred_check
      _
    $region11: #{tpu_custom_call.1} parent=1 // pred_check_branch
      %42 = sbr.rel (0) target = $region13
    $region12: #{tpu_custom_call.1} parent=1 // pred_region
      %s44 = ssub.s32 1024, 1024
      %45 = vsyncadd [#allocation7], %s44
      %s46 = sshll.u32 [#allocation8], 4
      %s47 = int_to_ptr.vmem [resolvable:$true] %s46
      %52 = dma.hbm_to_vmem [thread:$0]  %s2, 1024, %s47, [#allocation7], 64, 64, 4
    $region13: #{tpu_custom_call.1} parent=1 // pred_fallthru
      _
    // Predicated region
    $region14: #{tpu_custom_call.1} parent=1 // pred_check
      _
    $region15: #{tpu_custom_call.1} parent=1 // pred_check_branch
      %54 = sbr.rel (0) target = $region17
    $region16: #{tpu_custom_call.1} parent=1 // pred_region
      %s56 = ssub.s32 64, 64
      %57 = vsyncadd [#allocation10], %s56
      %s59 = sshll.u32 [#allocation9], 4
      %s60 = int_to_ptr.vmem [resolvable:$true] %s59
      %62 = dma.hbm_to_vmem [thread:$0]  %s3, 64, %s60, [#allocation10]
    $region17: #{tpu_custom_call.1} parent=1 // pred_fallthru
      _
    // Predicated region
    $region18: #{tpu_custom_call.1} parent=1 // pred_check
      _
    $region19: #{tpu_custom_call.1} parent=1 // pred_check_branch
      %64 = sbr.rel (0) target = $region21
    $region20: #{tpu_custom_call.1} parent=1 // pred_region
      %s66 = ssub.s32 16, 16
      %67 = vsyncadd [#allocation10], %s66
      %s69 = sshll.u32 [#allocation11], 4
      %s70 = int_to_ptr.vmem [resolvable:$true] %s69
      %72 = dma.hbm_to_vmem [thread:$0]  %s4, 16, %s70, [#allocation10]
    $region21: #{tpu_custom_call.1} parent=1 // pred_fallthru
      _
    // Predicated region
    $region22: #{tpu_custom_call.1} parent=1 // pred_check
      _
    $region23: #{tpu_custom_call.1} parent=1 // pred_check_branch
      %74 = sbr.rel (0) target = $region25
    $region24: #{tpu_custom_call.1} parent=1 // pred_region
      %s76 = ssub.s32 256, 256
      %77 = vsyncadd [#allocation13], %s76
      %s78 = sshll.u32 [#allocation12], 4
      %s79 = int_to_ptr.vmem [resolvable:$true] %s78
      %84 = dma.hbm_to_vmem [thread:$0]  %s5, 256, %s79, [#allocation13], 64, 64, 4
    $region25: #{tpu_custom_call.1} parent=1 // pred_fallthru
      _
    // Predicated region
    $region26: #{tpu_custom_call.1} parent=1 // pred_check
      _
    $region27: #{tpu_custom_call.1} parent=1 // pred_check_branch
      %86 = sbr.rel (0) target = $region29
    $region28: #{tpu_custom_call.1} parent=1 // pred_region
      %s88 = ssub.s32 16, 16
      %89 = vsyncadd [#allocation13], %s88
      %s91 = sshll.u32 [#allocation14], 4
      %s92 = int_to_ptr.vmem [resolvable:$true] %s91
      %94 = dma.hbm_to_vmem [thread:$0]  %s6, 16, %s92, [#allocation13]
    $region29: #{tpu_custom_call.1} parent=1 // pred_fallthru
      _
    // Predicated region
    $region30: #{tpu_custom_call.1} parent=1 // pred_check
      _
    $region31: #{tpu_custom_call.1} parent=1 // pred_check_branch
      %96 = sbr.rel (0) target = $region33
    $region32: #{tpu_custom_call.1} parent=1 // pred_region
      %s98 = ssub.s32 16, 16
      %99 = vsyncadd [#allocation16], %s98
      %s101 = sshll.u32 [#allocation15], 4
      %s102 = int_to_ptr.vmem [resolvable:$true] %s101
      %104 = dma.hbm_to_vmem [thread:$0]  %s7, 16, %s102, [#allocation16]
    $region33: #{tpu_custom_call.1} parent=1 // pred_fallthru
      _
    // Predicated region
    $region34: #{tpu_custom_call.1} parent=1 // pred_check
      _
    $region35: #{tpu_custom_call.1} parent=1 // pred_check_branch
      %106 = sbr.rel (0) target = $region37
    $region36: #{tpu_custom_call.1} parent=1 // pred_region
      _
    $region37: #{tpu_custom_call.1} parent=1 // pred_fallthru
      _
    // Predicated region
    $region38: #{tpu_custom_call.1} parent=1 // pred_check
      _
    $region39: #{tpu_custom_call.1} parent=1 // pred_check_branch
      %108 = sbr.rel (0) target = $region41
    $region40: #{tpu_custom_call.1} parent=1 // pred_region
      %109 = dma.done [#allocation4], 128
    $region41: #{tpu_custom_call.1} parent=1 // pred_fallthru
      _
    // Predicated region
    $region42: #{tpu_custom_call.1} parent=1 // pred_check
      _
    $region43: #{tpu_custom_call.1} parent=1 // pred_check_branch
      %111 = sbr.rel (0) target = $region45
    $region44: #{tpu_custom_call.1} parent=1 // pred_region
      %112 = dma.done [#allocation7], 128
    $region45: #{tpu_custom_call.1} parent=1 // pred_fallthru
      _
    // Predicated region
    $region46: #{tpu_custom_call.1} parent=1 // pred_check
      _
    $region47: #{tpu_custom_call.1} parent=1 // pred_check_branch
      %114 = sbr.rel (0) target = $region49
    $region48: #{tpu_custom_call.1} parent=1 // pred_region
      %115 = dma.done [#allocation7], 1024
    $region49: #{tpu_custom_call.1} parent=1 // pred_fallthru
      _
    // Predicated region
    $region50: #{tpu_custom_call.1} parent=1 // pred_check
      _
    $region51: #{tpu_custom_call.1} parent=1 // pred_check_branch
      %117 = sbr.rel (0) target = $region53
    $region52: #{tpu_custom_call.1} parent=1 // pred_region
      %118 = dma.done [#allocation10], 64
    $region53: #{tpu_custom_call.1} parent=1 // pred_fallthru
      _
    // Predicated region
    $region54: #{tpu_custom_call.1} parent=1 // pred_check
      _
    $region55: #{tpu_custom_call.1} parent=1 // pred_check_branch
      %120 = sbr.rel (0) target = $region57
    $region56: #{tpu_custom_call.1} parent=1 // pred_region
      %121 = dma.done [#allocation10], 16
    $region57: #{tpu_custom_call.1} parent=1 // pred_fallthru
      _
    // Predicated region
    $region58: #{tpu_custom_call.1} parent=1 // pred_check
      _
    $region59: #{tpu_custom_call.1} parent=1 // pred_check_branch
      %123 = sbr.rel (0) target = $region61
    $region60: #{tpu_custom_call.1} parent=1 // pred_region
      %124 = dma.done [#allocation13], 256
    $region61: #{tpu_custom_call.1} parent=1 // pred_fallthru
      _
    // Predicated region
    $region62: #{tpu_custom_call.1} parent=1 // pred_check
      _
    $region63: #{tpu_custom_call.1} parent=1 // pred_check_branch
      %126 = sbr.rel (0) target = $region65
    $region64: #{tpu_custom_call.1} parent=1 // pred_region
      %127 = dma.done [#allocation13], 16
    $region65: #{tpu_custom_call.1} parent=1 // pred_fallthru
      _
    // Predicated region
    $region66: #{tpu_custom_call.1} parent=1 // pred_check
      _
    $region67: #{tpu_custom_call.1} parent=1 // pred_check_branch
      %129 = sbr.rel (0) target = $region69
    $region68: #{tpu_custom_call.1} parent=1 // pred_region
      %130 = dma.done [#allocation16], 16
    $region69: #{tpu_custom_call.1} parent=1 // pred_fallthru
      _
    %v132 = vld [vmem:[#allocation3] sm:$0xff]
    %v133 = vlaneseq
    %v134 = vshrl.u32 %v133, 7
    %v135 = vsub.s32 0, %v134
    %v136 = vrot.slane %v132, %v135
    %138 = vbcast.lane.b32.xlu0 %v136, 256
    %v139 = vpop.permute.xlu0 %138
    %v140 = vlaneseq
    %v141 = vshrl.u32 %v140, 7
    %v142 = vsub.s32 1, %v141
    %v143 = vrot.slane %v132, %v142
    %145 = vbcast.lane.b32.xlu0 %v143, 256
    %v146 = vpop.permute.xlu0 %145
    %v147 = vlaneseq
    %v148 = vshrl.u32 %v147, 7
    %v149 = vsub.s32 2, %v148
    %v150 = vrot.slane %v132, %v149
    %152 = vbcast.lane.b32.xlu0 %v150, 256
    %v153 = vpop.permute.xlu0 %152
    %v154 = vlaneseq
    %v155 = vshrl.u32 %v154, 7
    %v156 = vsub.s32 3, %v155
    %v157 = vrot.slane %v132, %v156
    %159 = vbcast.lane.b32.xlu0 %v157, 256
    %v160 = vpop.permute.xlu0 %159
    %v161 = vlaneseq
    %v162 = vshrl.u32 %v161, 7
    %v163 = vsub.s32 4, %v162
    %v164 = vrot.slane %v132, %v163
    %166 = vbcast.lane.b32.xlu0 %v164, 256
    %v167 = vpop.permute.xlu0 %166
    %v168 = vlaneseq
    %v169 = vshrl.u32 %v168, 7
    %v170 = vsub.s32 5, %v169
    %v171 = vrot.slane %v132, %v170
    %173 = vbcast.lane.b32.xlu0 %v171, 256
    %v174 = vpop.permute.xlu0 %173
    %v175 = vlaneseq
    %v176 = vshrl.u32 %v175, 7
    %v177 = vsub.s32 6, %v176
    %v178 = vrot.slane %v132, %v177
    %180 = vbcast.lane.b32.xlu0 %v178, 256
    %v181 = vpop.permute.xlu0 %180
    %v182 = vlaneseq
    %v183 = vshrl.u32 %v182, 7
    %v184 = vsub.s32 7, %v183
    %v185 = vrot.slane %v132, %v184
    %187 = vbcast.lane.b32.xlu0 %v185, 256
    %v188 = vpop.permute.xlu0 %187
    %v189 = vlaneseq
    %v190 = vand.u32 %v189, 127
    %vm191 = vcmp.eq.s32.totalorder %v139, %v190
    %vm192 = vcmp.eq.s32.totalorder %v146, %v190
    %vm193 = vcmp.eq.s32.totalorder %v153, %v190
    %vm194 = vcmp.eq.s32.totalorder %v160, %v190
    %vm195 = vcmp.eq.s32.totalorder %v167, %v190
    %vm196 = vcmp.eq.s32.totalorder %v174, %v190
    %vm197 = vcmp.eq.s32.totalorder %v181, %v190
    %vm198 = vcmp.eq.s32.totalorder %v188, %v190
    %v199 = vsel %vm191, 1, 0
    %v200 = vsel %vm192, 1, 0
    %v201 = vsel %vm193, 1, 0
    %v202 = vsel %vm194, 1, 0
    %v203 = vsel %vm195, 1, 0
    %v204 = vsel %vm196, 1, 0
    %v205 = vsel %vm197, 1, 0
    %v206 = vsel %vm198, 1, 0
    %v207 = vcvt.s32.f32 %v199
    %v208 = vcvt.s32.f32 %v200
    %v209 = vcvt.s32.f32 %v201
    %v210 = vcvt.s32.f32 %v202
    %v211 = vcvt.s32.f32 %v203
    %v212 = vcvt.s32.f32 %v204
    %v213 = vcvt.s32.f32 %v205
    %v214 = vcvt.s32.f32 %v206
    %v215 = vrot.slane %v207, 4
    %v216 = vadd.f32 %v207, %v215
    %v217 = vrot.slane %v216, 2
    %v218 = vadd.f32 %v216, %v217
    %v219 = vrot.slane %v218, 1
    %v220 = vadd.f32 %v218, %v219
    %v221 = vrot.slane %v208, 4
    %v222 = vadd.f32 %v208, %v221
    %v223 = vrot.slane %v222, 2
    %v224 = vadd.f32 %v222, %v223
    %v225 = vrot.slane %v224, 1
    %v226 = vadd.f32 %v224, %v225
    %v227 = vrot.slane %v209, 4
    %v228 = vadd.f32 %v209, %v227
    %v229 = vrot.slane %v228, 2
    %v230 = vadd.f32 %v228, %v229
    %v231 = vrot.slane %v230, 1
    %v232 = vadd.f32 %v230, %v231
    %v233 = vrot.slane %v210, 4
    %v234 = vadd.f32 %v210, %v233
    %v235 = vrot.slane %v234, 2
    %v236 = vadd.f32 %v234, %v235
    %v237 = vrot.slane %v236, 1
    %v238 = vadd.f32 %v236, %v237
    %v239 = vrot.slane %v211, 4
    %v240 = vadd.f32 %v211, %v239
    %v241 = vrot.slane %v240, 2
    %v242 = vadd.f32 %v240, %v241
    %v243 = vrot.slane %v242, 1
    %v244 = vadd.f32 %v242, %v243
    %v245 = vrot.slane %v212, 4
    %v246 = vadd.f32 %v212, %v245
    %v247 = vrot.slane %v246, 2
    %v248 = vadd.f32 %v246, %v247
    %v249 = vrot.slane %v248, 1
    %v250 = vadd.f32 %v248, %v249
    %v251 = vrot.slane %v213, 4
    %v252 = vadd.f32 %v213, %v251
    %v253 = vrot.slane %v252, 2
    %v254 = vadd.f32 %v252, %v253
    %v255 = vrot.slane %v254, 1
    %v256 = vadd.f32 %v254, %v255
    %v257 = vrot.slane %v214, 4
    %v258 = vadd.f32 %v214, %v257
    %v259 = vrot.slane %v258, 2
    %v260 = vadd.f32 %v258, %v259
    %v261 = vrot.slane %v260, 1
    %v262 = vadd.f32 %v260, %v261
    %v263 = vadd.f32 %v220, 0.0
    %v264 = vadd.f32 %v226, 0.0
    %v265 = vadd.f32 %v232, 0.0
    %v266 = vadd.f32 %v238, 0.0
    %v267 = vadd.f32 %v244, 0.0
    %v268 = vadd.f32 %v250, 0.0
    %v269 = vadd.f32 %v256, 0.0
    %v270 = vadd.f32 %v262, 0.0
    %v271 = vpack.c.bf16 %v263, %v263
    %v272 = vpack.c.bf16 %v264, %v264
    %v273 = vpack.c.bf16 %v265, %v265
    %v274 = vpack.c.bf16 %v266, %v266
    %v275 = vpack.c.bf16 %v267, %v267
    %v276 = vpack.c.bf16 %v268, %v268
    %v277 = vpack.c.bf16 %v269, %v269
    %v278 = vpack.c.bf16 %v270, %v270
    %v279 = vld [vmem:[#allocation8] sm:$0xf]
    %v280 = vld [vmem:[#allocation8 + $0x4] sm:$0xf]
    %v281 = vld [vmem:[#allocation8 + $0x8] sm:$0xf]
    %v282 = vld [vmem:[#allocation8 + $0xc] sm:$0xf]
    %v283 = vld [vmem:[#allocation8 + $0x10] sm:$0xf]
    %v284 = vld [vmem:[#allocation8 + $0x14] sm:$0xf]
    %v285 = vld [vmem:[#allocation8 + $0x18] sm:$0xf]
    %v286 = vld [vmem:[#allocation8 + $0x1c] sm:$0xf]
    %v287 = vld [vmem:[#allocation8 + $0x20] sm:$0xf]
    %v288 = vld [vmem:[#allocation8 + $0x24] sm:$0xf]
    %v289 = vld [vmem:[#allocation8 + $0x28] sm:$0xf]
    %v290 = vld [vmem:[#allocation8 + $0x2c] sm:$0xf]
    %v291 = vld [vmem:[#allocation8 + $0x30] sm:$0xf]
    %v292 = vld [vmem:[#allocation8 + $0x34] sm:$0xf]
    %v293 = vld [vmem:[#allocation8 + $0x38] sm:$0xf]
    %v294 = vld [vmem:[#allocation8 + $0x3c] sm:$0xf]
    %v295 = vld [vmem:[#allocation6] sm:$0xff]
    %v296 = vpack.c.bf16 %v295, %v295
    %v297 = vld [vmem:[#allocation9] sm:$0x7]
    %vm298 = vcmask 48128
    %v300 = vsel %vm298, %v296, 0
    %vm302 = vcmask 1042432
    %v304 = vsel %vm302, %v297, 0
    %306 = vmatprep.subr.bf16.mxu0 0
    %307 = vmatpush1.bf16.msra.mxu0 %v304
    %308 = vmatprep.subr.bf16.mxu0 0
    %309 = vmatpush1.bf16.msra.mxu0 0
    %310 = vmatprep.subr.bf16.mxu0 0
    %311 = vmatpush1.bf16.msra.mxu0 0
    %312 = vmatprep.subr.bf16.mxu0 0
    %313 = vmatpush1.bf16.msra.mxu0 0
    %314 = vmatprep.subr.bf16.mxu0 0
    %315 = vmatpush1.bf16.msra.mxu0 0
    %316 = vmatprep.subr.bf16.mxu0 0
    %317 = vmatpush1.bf16.msra.mxu0 0
    %318 = vmatprep.subr.bf16.mxu0 0
    %319 = vmatpush1.bf16.msra.mxu0 0
    %320 = vmatprep.subr.bf16.mxu0 0
    %321 = vmatpush1.bf16.msra.mxu0 0
    %322 = vmatprep.subr.bf16.mxu0 0
    %323 = vmatpush1.bf16.msra.mxu0 0
    %324 = vmatprep.subr.bf16.mxu0 0
    %325 = vmatpush1.bf16.msra.mxu0 0
    %326 = vmatprep.subr.bf16.mxu0 0
    %327 = vmatpush1.bf16.msra.mxu0 0
    %328 = vmatprep.subr.bf16.mxu0 0
    %329 = vmatpush1.bf16.msra.mxu0 0
    %330 = vmatprep.subr.bf16.mxu0 0
    %331 = vmatpush1.bf16.msra.mxu0 0
    %332 = vmatprep.subr.bf16.mxu0 0
    %333 = vmatpush1.bf16.msra.mxu0 0
    %334 = vmatprep.subr.bf16.mxu0 0
    %335 = vmatpush1.bf16.msra.mxu0 0
    %336 = vmatprep.subr.bf16.mxu0 0
    %337 = vmatpush1.bf16.msra.mxu0 0
    %338 = vmatprep.mubr.bf16.mxu0 0
    %339 = vmatmul.mubr.bf16.gmra.mrb[0].mxu0 %v300
    %v340 = vpop.f32.mrb[0].mxu0
    %v341 = vadd.f32 0.0, %v340
    %v342 = vpop.f32.mrb[0].mxu0
    %v343 = vpop.f32.mrb[0].mxu0
    %v344 = vpop.f32.mrb[0].mxu0
    %345 = vdwg.mxu0
    %v354 = vunpack.c.l.b16 %v271
    %v355 = vunpack.c.l.b16 %v272
    %v356 = vunpack.c.l.b16 %v273
    %v357 = vunpack.c.l.b16 %v274
    %v358 = vunpack.c.l.b16 %v275
    %v359 = vunpack.c.l.b16 %v276
    %v360 = vunpack.c.l.b16 %v277
    %v361 = vunpack.c.l.b16 %v278
    %vm362 = vcmask 1041409
    %v363 = vsel %vm362, %v355, %v354
    %vm364 = vcmask 1042434
    %v365 = vsel %vm364, %v356, %v363
    %vm366 = vcmask 1043459
    %v367 = vsel %vm366, %v357, %v365
    %vm368 = vcmask 1044484
    %v369 = vsel %vm368, %v358, %v367
    %vm370 = vcmask 1045509
    %v371 = vsel %vm370, %v359, %v369
    %vm372 = vcmask 1046534
    %v373 = vsel %vm372, %v360, %v371
    %vm374 = vcmask 1047559
    %v375 = vsel %vm374, %v361, %v373
    %v376 = vpack.c.b16 %v375, %v375
    %v394 = vunpack.c.l.b16 %v279
    %v395 = vunpack.c.l.b16 %v280
    %v396 = vunpack.c.l.b16 %v281
    %v397 = vunpack.c.l.b16 %v282
    %v398 = vunpack.c.l.b16 %v283
    %v399 = vunpack.c.l.b16 %v284
    %v400 = vunpack.c.l.b16 %v285
    %v401 = vunpack.c.l.b16 %v286
    %v402 = vunpack.c.l.b16 %v287
    %v403 = vunpack.c.l.b16 %v288
    %v404 = vunpack.c.l.b16 %v289
    %v405 = vunpack.c.l.b16 %v290
    %v406 = vunpack.c.l.b16 %v291
    %v407 = vunpack.c.l.b16 %v292
    %v408 = vunpack.c.l.b16 %v293
    %v409 = vunpack.c.l.b16 %v294
    %v410 = vpack.c.b16 %v395, %v394
    %v411 = vpack.c.b16 %v397, %v396
    %v412 = vpack.c.b16 %v399, %v398
    %v413 = vpack.c.b16 %v401, %v400
    %v414 = vpack.c.b16 %v403, %v402
    %v415 = vpack.c.b16 %v405, %v404
    %v416 = vpack.c.b16 %v407, %v406
    %v417 = vpack.c.b16 %v409, %v408
    %426 = vmatprep.subr.bf16.mxu0 0
    %427 = vmatpush1.bf16.msra.mxu0 %v410
    %428 = vmatprep.subr.bf16.mxu0 0
    %429 = vmatpush1.bf16.msra.mxu0 %v411
    %430 = vmatprep.subr.bf16.mxu0 0
    %431 = vmatpush1.bf16.msra.mxu0 %v412
    %432 = vmatprep.subr.bf16.mxu0 0
    %433 = vmatpush1.bf16.msra.mxu0 %v413
    %434 = vmatprep.subr.bf16.mxu0 0
    %435 = vmatpush1.bf16.msra.mxu0 %v414
    %436 = vmatprep.subr.bf16.mxu0 0
    %437 = vmatpush1.bf16.msra.mxu0 %v415
    %438 = vmatprep.subr.bf16.mxu0 0
    %439 = vmatpush1.bf16.msra.mxu0 %v416
    %440 = vmatprep.subr.bf16.mxu0 0
    %441 = vmatpush1.bf16.msra.mxu0 %v417
    %442 = vmatprep.subr.bf16.mxu0 0
    %443 = vmatpush1.bf16.msra.mxu0 0
    %444 = vmatprep.subr.bf16.mxu0 0
    %445 = vmatpush1.bf16.msra.mxu0 0
    %446 = vmatprep.subr.bf16.mxu0 0
    %447 = vmatpush1.bf16.msra.mxu0 0
    %448 = vmatprep.subr.bf16.mxu0 0
    %449 = vmatpush1.bf16.msra.mxu0 0
    %450 = vmatprep.subr.bf16.mxu0 0
    %451 = vmatpush1.bf16.msra.mxu0 0
    %452 = vmatprep.subr.bf16.mxu0 0
    %453 = vmatpush1.bf16.msra.mxu0 0
    %454 = vmatprep.subr.bf16.mxu0 0
    %455 = vmatpush1.bf16.msra.mxu0 0
    %456 = vmatprep.subr.bf16.mxu0 0
    %457 = vmatpush1.bf16.msra.mxu0 0
    %458 = vmatprep.mubr.bf16.mxu0 0
    %459 = vmatmul.mubr.bf16.gmra.mrb[0].mxu0 %v376
    %v460 = vpop.f32.mrb[0].mxu0
    %v461 = vadd.f32 %v341, %v460
    %v462 = vpop.f32.mrb[0].mxu0
    %v463 = vpop.f32.mrb[0].mxu0
    %v464 = vpop.f32.mrb[0].mxu0
    %465 = vdwg.mxu0
    %v466 = vld [vmem:[#allocation11] sm:$0x1]
    %v468 = vlaneseq
    %v469 = vshrl.u32 %v468, 7
    %v470 = vsub.s32 0, %v469
    %v471 = vrot.slane %v466, %v470
    %v473 = vadd.f32 %v461, %v471
    %v474 = vmax.f32 %v473, 0.0
    %v475 = vpack.c.bf16 %v474, %v474
    %v476 = vld [vmem:[#allocation12] sm:$0xf]
    %v477 = vld [vmem:[#allocation12 + $0x4] sm:$0xf]
    %v478 = vld [vmem:[#allocation12 + $0x8] sm:$0xf]
    %v479 = vld [vmem:[#allocation12 + $0xc] sm:$0xf]
    %v480 = vld [vmem:[#allocation14] sm:$0x1]
    %v482 = vlaneseq
    %v483 = vshrl.u32 %v482, 7
    %v484 = vsub.s32 0, %v483
    %v485 = vrot.slane %v480, %v484
    %v491 = vunpack.c.l.b16 %v476
    %v492 = vunpack.c.l.b16 %v477
    %v493 = vunpack.c.l.b16 %v478
    %v494 = vunpack.c.l.b16 %v479
    %v495 = vpack.c.b16 %v492, %v491
    %v496 = vpack.c.b16 %v494, %v493
    %vm499 = vcmask 261120
    %v501 = vsel %vm499, %v475, 0
    %503 = vmatprep.subr.bf16.mxu0 0
    %504 = vmatpush1.bf16.msra.mxu0 %v495
    %505 = vmatprep.subr.bf16.mxu0 0
    %506 = vmatpush1.bf16.msra.mxu0 %v496
    %507 = vmatprep.subr.bf16.mxu0 0
    %508 = vmatpush1.bf16.msra.mxu0 0
    %509 = vmatprep.subr.bf16.mxu0 0
    %510 = vmatpush1.bf16.msra.mxu0 0
    %511 = vmatprep.subr.bf16.mxu0 0
    %512 = vmatpush1.bf16.msra.mxu0 0
    %513 = vmatprep.subr.bf16.mxu0 0
    %514 = vmatpush1.bf16.msra.mxu0 0
    %515 = vmatprep.subr.bf16.mxu0 0
    %516 = vmatpush1.bf16.msra.mxu0 0
    %517 = vmatprep.subr.bf16.mxu0 0
    %518 = vmatpush1.bf16.msra.mxu0 0
    %519 = vmatprep.subr.bf16.mxu0 0
    %520 = vmatpush1.bf16.msra.mxu0 0
    %521 = vmatprep.subr.bf16.mxu0 0
    %522 = vmatpush1.bf16.msra.mxu0 0
    %523 = vmatprep.subr.bf16.mxu0 0
    %524 = vmatpush1.bf16.msra.mxu0 0
    %525 = vmatprep.subr.bf16.mxu0 0
    %526 = vmatpush1.bf16.msra.mxu0 0
    %527 = vmatprep.subr.bf16.mxu0 0
    %528 = vmatpush1.bf16.msra.mxu0 0
    %529 = vmatprep.subr.bf16.mxu0 0
    %530 = vmatpush1.bf16.msra.mxu0 0
    %531 = vmatprep.subr.bf16.mxu0 0
    %532 = vmatpush1.bf16.msra.mxu0 0
    %533 = vmatprep.subr.bf16.mxu0 0
    %534 = vmatpush1.bf16.msra.mxu0 0
    %535 = vmatprep.mubr.bf16.mxu0 0
    %536 = vmatmul.mubr.bf16.gmra.mrb[0].mxu0 %v501
    %v537 = vpop.f32.mrb[0].mxu0
    %v538 = vadd.f32 %v485, %v537
    %v539 = vpop.f32.mrb[0].mxu0
    %v540 = vpop.f32.mrb[0].mxu0
    %v541 = vpop.f32.mrb[0].mxu0
    %542 = vdwg.mxu0
    %v543 = vmax.f32 %v538, 0.0
    %v544 = vld [vmem:[#allocation15] sm:$0x1]
    %v546 = vlaneseq
    %v547 = vshrl.u32 %v546, 7
    %v548 = vsub.s32 0, %v547
    %v549 = vrot.slane %v544, %v548
    %v551 = vmul.f32 %v543, %v549
    %vm552 = vcmask 130048
    %v553 = vsel %vm552, %v551, 0.0
    %554 = vadd.xlane.f32.xlu0 %v553
    %v555 = vpop.xlane.xlu0 %554
    %s556 = sld [smem:[#allocation2]]
    %v557 = vstv %s556
    %v558 = vadd.f32 %v555, %v557
    %v559 = vxor.u32 %v558, 2147483648
    %v560 = vmul.f32 %v559, 1.442695
    %v561 = vpow.pop %v560
    %v562 = vadd.f32 %v561, 1.0
    %v563 = vrcp.pop %v562
    %v564 = vmul.f32 1.0, %v563
    %v566 = vlaneseq
    %v567 = vshrl.u32 %v566, 7
    %v568 = vsub.s32 %v190, %v567
    %v569 = vrot.slane %v564, %v568
    %vm571 = vcmask 57344
    %572 = vst.msk [vmem:[#allocation17] sm:$0x1] %vm571, %v569
    // Predicated region
    $region70: #{tpu_custom_call.1} parent=1 // pred_check
      _
    $region71: #{tpu_custom_call.1} parent=1 // pred_check_branch
      %574 = sbr.rel (0) target = $region73
    $region72: #{tpu_custom_call.1} parent=1 // pred_region
      %s576 = ssub.s32 16, 16
      %577 = vsyncadd [#allocation5], %s576
      %s579 = sshll.u32 [#allocation17], 4
      %s580 = int_to_ptr.vmem [resolvable:$true] %s579
      %582 = dma.vmem_to_hbm [thread:$0]  %s580, 16, %s9, [#allocation5]
    $region73: #{tpu_custom_call.1} parent=1 // pred_fallthru
      _
    // Predicated region
    $region74: #{tpu_custom_call.1} parent=1 // pred_check
      _
    $region75: #{tpu_custom_call.1} parent=1 // pred_check_branch
      %584 = sbr.rel (0) target = $region77
    $region76: #{tpu_custom_call.1} parent=1 // pred_region
      %585 = dma.done [#allocation5], 16
    $region77: #{tpu_custom_call.1} parent=1 // pred_fallthru
      _
    %586 = vsyncpa [#allocation4], 1
    %587 = vsyncpa [#allocation7], 1
    %588 = vsyncpa [#allocation10], 1
    %589 = vsyncpa [#allocation13], 1
    %590 = vsyncpa [#allocation16], 1
    %591 = vsyncpa [#allocation5], 1

</llo_original>
